<compile_context>
chip_gen: v5e
topology: v5e:2x2
jax: 0.10.0
libtpu: 0.0.40
codegen_flags: <defaults>
</compile_context>

<pallas_src>
import functools

import jax
import jax.numpy as jnp
from jax.experimental import pallas as pl
from jax.experimental.pallas import tpu as pltpu


def _mha_kernel(x_ref, wqkv_ref, wo_ref, bo_ref, o_ref,
                *, num_heads, head_dim, block_b, seq_len):
    H, hd, T = num_heads, head_dim, seq_len
    d_out = H * hd
    d_in = x_ref.shape[-1]
    rows = block_b * T

    # ---- fused QKV projection over the flattened (block_b*T) row slab ------
    # (Q columns of wqkv are pre-scaled by 1/sqrt(hd) on the host.)
    xm = x_ref[...].reshape(rows, d_in).astype(jnp.bfloat16)
    qkv = jnp.dot(xm, wqkv_ref[...], preferred_element_type=jnp.float32)
    qkv = qkv.astype(jnp.bfloat16)                      # (rows, 3*d_out)

    def split_heads(base):
        # (H*block_b, T, hd): head-major batched layout, no per-batch Python loop.
        stacked = jnp.stack(
            [qkv[:, base + h * hd: base + (h + 1) * hd] for h in range(H)],
            axis=0)                                     # (H, rows, hd)
        return stacked.reshape(H * block_b, T, hd)      # major-dim regroup (T % 8 == 0)

    q = split_heads(0)
    k = split_heads(d_out)
    v = split_heads(2 * d_out)

    # ---- scores: single batched matmul over H*block_b ----------------------
    s = jax.lax.dot_general(q, k, (((2,), (2,)), ((0,), (0,))),
                            preferred_element_type=jnp.float32)   # (BH, T, T) f32

    # Additive causal mask, broadcast over the batch*head dim (finite so a
    # fully-masked row would average instead of NaN; causal diag is always kept).
    rix = jax.lax.broadcasted_iota(jnp.int32, (T, T), 0)
    cix = jax.lax.broadcasted_iota(jnp.int32, (T, T), 1)
    mask_add = jnp.where(cix <= rix, jnp.float32(0.0), jnp.float32(-1e30))
    s = s + mask_add[None, :, :]

    # ---- numerically-stable softmax (f32), normalization deferred ----------
    m = jnp.max(s, axis=-1, keepdims=True)              # (BH, T, 1)
    p = jnp.exp(s - m)                                  # (BH, T, T) f32
    l = jnp.sum(p, axis=-1, keepdims=True)              # (BH, T, 1)

    # ---- context: single batched matmul, then cheap O(BH*T*hd) normalize ---
    ctx = jax.lax.dot_general(p.astype(jnp.bfloat16), v,
                              (((2,), (1,)), ((0,), (0,))),
                              preferred_element_type=jnp.float32)  # (BH, T, hd)
    ctx = ctx * pl.reciprocal(l, approx=True)

    # ---- output projection: per-head contraction + reduce over heads -------
    ctx_hm = ctx.reshape(H, rows, hd).astype(jnp.bfloat16)          # (H, rows, hd)
    out_h = jax.lax.dot_general(ctx_hm, wo_ref[...],
                                (((2,), (1,)), ((0,), (0,))),
                                preferred_element_type=jnp.float32)  # (H, rows, d_out)
    out = jnp.sum(out_h, axis=0) + bo_ref[...]                       # (rows, d_out)
    o_ref[...] = out.reshape(block_b, T, d_out).astype(o_ref.dtype)


def _pick_block_b(B, T, max_rows=512):
    """Largest divisor of B with block_b*T <= max_rows, keeping grid length >= 2
    (so both v7x TensorCores get work via the 'parallel' axis)."""
    best = 1
    for cand in range(1, B + 1):
        if B % cand != 0:
            continue
        if cand * T > max_rows:
            continue
        if B >= 2 and (B // cand) < 2:
            continue
        best = cand
    return best


def _vmem_limit_bytes(block_b, T, d_in, d_out, H):
    """Rough per-step VMEM footprint with headroom; capped for v7x's 64 MiB."""
    rows = block_b * T
    bh = block_b * H
    x_io = 2 * rows * d_in * 4                     # double-buffered x tiles (f32)
    out_io = 2 * rows * d_out * 4                  # double-buffered out tiles (f32)
    weights = (d_in * 3 * d_out + d_out * d_out) * 2 + d_out * 4   # bf16 W + f32 bias
    interm = (rows * 3 * d_out * 6                 # qkv f32 + bf16
              + 3 * rows * d_out * 2               # head-stacked q/k/v bf16
              + bh * T * T * 6                     # scores f32 + p bf16
              + rows * d_out * 6                   # ctx f32 + bf16
              + (H + 1) * rows * d_out * 4)        # per-head out partials + out f32
    est = x_io + out_io + weights + interm
    return int(min(64 * 1024 * 1024, max(8 * 1024 * 1024, int(est * 1.5))))


def multi_head_attention(x, wq, wk, wv, wo, bo, *, num_heads, block_b=None):
    """x: (B, T, d_in); wq/wk/wv: (d_in, d_out); wo: (d_out, d_out); bo: (d_out,)."""
    B, T, d_in = x.shape
    d_out = wq.shape[1]
    assert d_out % num_heads == 0
    head_dim = d_out // num_heads

    # Host-side weight prep: fold 1/sqrt(hd) into Q, fuse QKV, cast to bf16,
    # reshape Wo head-major for the per-head output contraction.
    scale = 1.0 / (head_dim ** 0.5)
    wqkv = jnp.concatenate([wq * scale, wk, wv], axis=1).astype(jnp.bfloat16)
    wo_hm = wo.reshape(num_heads, head_dim, d_out).astype(jnp.bfloat16)
    bo2 = bo.reshape(1, d_out).astype(jnp.float32)

    if block_b is None:
        block_b = _pick_block_b(B, T)
    assert B % block_b == 0
    grid = (B // block_b,)

    kernel = functools.partial(_mha_kernel, num_heads=num_heads, head_dim=head_dim,
                               block_b=block_b, seq_len=T)

    return pl.pallas_call(
        kernel,
        out_shape=jax.ShapeDtypeStruct((B, T, d_out), x.dtype),
        grid_spec=pltpu.PrefetchScalarGridSpec(
            num_scalar_prefetch=0,
            grid=grid,
            in_specs=[
                # x tile: varies per step -> keep default double-buffering.
                pl.BlockSpec((block_b, T, d_in), lambda i: (i, 0, 0)),
                # Weights/bias: constant index_map -> single-buffered (saves VMEM).
                pl.BlockSpec((d_in, 3 * d_out), lambda i: (0, 0),
                             pipeline_mode=pl.Buffered(1)),
                pl.BlockSpec((num_heads, head_dim, d_out), lambda i: (0, 0, 0),
                             pipeline_mode=pl.Buffered(1)),
                pl.BlockSpec((1, d_out), lambda i: (0, 0),
                             pipeline_mode=pl.Buffered(1)),
            ],
            out_specs=pl.BlockSpec((block_b, T, d_out), lambda i: (i, 0, 0)),
        ),
        compiler_params=pltpu.CompilerParams(
            dimension_semantics=("parallel",),
            vmem_limit_bytes=_vmem_limit_bytes(block_b, T, d_in, d_out, num_heads)),
    )(x, wqkv, wo_hm, bo2)


def _reference(x, wq, wk, wv, wo, bo, *, num_heads):
    """Pure-JAX (f32) replica of the PyTorch forward (eval mode)."""
    B, T, d_in = x.shape
    d_out = wq.shape[1]
    hd = d_out // num_heads
    q = (x @ wq).reshape(B, T, num_heads, hd).transpose(0, 2, 1, 3)
    k = (x @ wk).reshape(B, T, num_heads, hd).transpose(0, 2, 1, 3)
    v = (x @ wv).reshape(B, T, num_heads, hd).transpose(0, 2, 1, 3)
    s = jnp.einsum("bhqd,bhkd->bhqk", q, k) / (hd ** 0.5)
    mask = jnp.triu(jnp.ones((T, T), dtype=bool), k=1)
    s = jnp.where(mask, -jnp.inf, s)
    w = jax.nn.softmax(s, axis=-1)
    ctx = jnp.einsum("bhqk,bhkd->bhqd", w, v).transpose(0, 2, 1, 3).reshape(B, T, d_out)
    return ctx @ wo + bo


if __name__ == "__main__":
    # Small shapes consistent with the module's forward.
    B, T = 2, 8
    d_in, d_out, num_heads = 32, 32, 4

    key = jax.random.PRNGKey(0)
    kx, kq, kk, kv, ko, kb = jax.random.split(key, 6)

    x = jax.random.normal(kx, (B, T, d_in), dtype=jnp.float32)

    # Linear weights stored as (in, out), i.e. pre-transposed vs. PyTorch's (out, in).
    wq = jax.random.normal(kq, (d_in, d_out), dtype=jnp.float32) * 0.05
    wk = jax.random.normal(kk, (d_in, d_out), dtype=jnp.float32) * 0.05
    wv = jax.random.normal(kv, (d_in, d_out), dtype=jnp.float32) * 0.05
    wo = jax.random.normal(ko, (d_out, d_out), dtype=jnp.float32) * 0.05
    bo = jax.random.normal(kb, (d_out,), dtype=jnp.float32) * 0.05

    out = multi_head_attention(x, wq, wk, wv, wo, bo, num_heads=num_heads)
    out = jax.block_until_ready(out)

    ref = _reference(x, wq, wk, wv, wo, bo, num_heads=num_heads)
    assert out.shape == (B, T, d_out)
    # bf16 MXU operands (f32 accumulation) + approx reciprocal => bf16-level tolerance.
    assert jnp.allclose(out, ref, atol=2e-2, rtol=2e-2), "mismatch vs reference"

    print("KERNEL_OK")
</pallas_src>

<mosaic_0001>
module attributes {stable_mosaic.version = 11 : i64} {
  func.func @_mha_kernel(%arg0: i32, %arg1: memref<1x8x32xf32, #tpu.memory_space<vmem>>, %arg2: memref<32x96xbf16, #tpu.memory_space<vmem>>, %arg3: memref<4x8x32xbf16, #tpu.memory_space<vmem>>, %arg4: memref<1x32xf32, #tpu.memory_space<vmem>>, %arg5: memref<1x8x32xf32, #tpu.memory_space<vmem>>) attributes {dimension_semantics = [#tpu.dimension_semantics<parallel>], iteration_bounds = array<i64: 2>, scalar_prefetch = 0 : i64, scratch_operands = 0 : i64, tpu.core_type = #tpu.core_type<tc>, window_params = [{transform_indices = @transform_0, window_bounds = array<i64: 1, 8, 32>}, {pipeline_mode = #tpu.pipeline_mode<synchronous>, transform_indices = @transform_1, window_bounds = array<i64: 32, 96>}, {pipeline_mode = #tpu.pipeline_mode<synchronous>, transform_indices = @transform_2, window_bounds = array<i64: 4, 8, 32>}, {pipeline_mode = #tpu.pipeline_mode<synchronous>, transform_indices = @transform_3, window_bounds = array<i64: 1, 32>}, {transform_indices = @transform_4, window_bounds = array<i64: 1, 8, 32>}]} {
    %c0 = arith.constant 0 : index
    %c0_0 = arith.constant 0 : index
    %c0_1 = arith.constant 0 : index
    %0 = vector.load %arg1[%c0, %c0_0, %c0_1] : memref<1x8x32xf32, #tpu.memory_space<vmem>>, vector<1x8x32xf32>
    %1 = vector.shape_cast %0 : vector<1x8x32xf32> to vector<8x32xf32>
    %2 = arith.truncf %1 : vector<8x32xf32> to vector<8x32xbf16>
    %c0_2 = arith.constant 0 : index
    %c0_3 = arith.constant 0 : index
    %3 = vector.load %arg2[%c0_2, %c0_3] : memref<32x96xbf16, #tpu.memory_space<vmem>>, vector<32x96xbf16>
    %cst = arith.constant dense<0.000000e+00> : vector<8x96xf32>
    %4 = tpu.matmul %2, %3, %cst {dimension_numbers = #tpu.dot_dimension_numbers<[1], [0], [0], [1], [0, 0, 1, 1], [], []>} : vector<8x32xbf16>, vector<32x96xbf16>, vector<8x96xf32> -> vector<8x96xf32>
    %5 = arith.truncf %4 : vector<8x96xf32> to vector<8x96xbf16>
    %6 = vector.extract_strided_slice %5 {offsets = [0, 0], sizes = [8, 8], strides = [1, 1]} : vector<8x96xbf16> to vector<8x8xbf16>
    %7 = vector.extract_strided_slice %5 {offsets = [0, 8], sizes = [8, 8], strides = [1, 1]} : vector<8x96xbf16> to vector<8x8xbf16>
    %8 = vector.extract_strided_slice %5 {offsets = [0, 16], sizes = [8, 8], strides = [1, 1]} : vector<8x96xbf16> to vector<8x8xbf16>
    %9 = vector.extract_strided_slice %5 {offsets = [0, 24], sizes = [8, 8], strides = [1, 1]} : vector<8x96xbf16> to vector<8x8xbf16>
    %10 = vector.shape_cast %6 : vector<8x8xbf16> to vector<1x8x8xbf16>
    %11 = vector.shape_cast %7 : vector<8x8xbf16> to vector<1x8x8xbf16>
    %12 = vector.shape_cast %8 : vector<8x8xbf16> to vector<1x8x8xbf16>
    %13 = vector.shape_cast %9 : vector<8x8xbf16> to vector<1x8x8xbf16>
    %14 = tpu.concatenate %10, %11, %12, %13 in 0 : vector<1x8x8xbf16>, vector<1x8x8xbf16>, vector<1x8x8xbf16>, vector<1x8x8xbf16> -> vector<4x8x8xbf16>
    %15 = vector.extract_strided_slice %5 {offsets = [0, 32], sizes = [8, 8], strides = [1, 1]} : vector<8x96xbf16> to vector<8x8xbf16>
    %16 = vector.extract_strided_slice %5 {offsets = [0, 40], sizes = [8, 8], strides = [1, 1]} : vector<8x96xbf16> to vector<8x8xbf16>
    %17 = vector.extract_strided_slice %5 {offsets = [0, 48], sizes = [8, 8], strides = [1, 1]} : vector<8x96xbf16> to vector<8x8xbf16>
    %18 = vector.extract_strided_slice %5 {offsets = [0, 56], sizes = [8, 8], strides = [1, 1]} : vector<8x96xbf16> to vector<8x8xbf16>
    %19 = vector.shape_cast %15 : vector<8x8xbf16> to vector<1x8x8xbf16>
    %20 = vector.shape_cast %16 : vector<8x8xbf16> to vector<1x8x8xbf16>
    %21 = vector.shape_cast %17 : vector<8x8xbf16> to vector<1x8x8xbf16>
    %22 = vector.shape_cast %18 : vector<8x8xbf16> to vector<1x8x8xbf16>
    %23 = tpu.concatenate %19, %20, %21, %22 in 0 : vector<1x8x8xbf16>, vector<1x8x8xbf16>, vector<1x8x8xbf16>, vector<1x8x8xbf16> -> vector<4x8x8xbf16>
    %24 = vector.extract_strided_slice %5 {offsets = [0, 64], sizes = [8, 8], strides = [1, 1]} : vector<8x96xbf16> to vector<8x8xbf16>
    %25 = vector.extract_strided_slice %5 {offsets = [0, 72], sizes = [8, 8], strides = [1, 1]} : vector<8x96xbf16> to vector<8x8xbf16>
    %26 = vector.extract_strided_slice %5 {offsets = [0, 80], sizes = [8, 8], strides = [1, 1]} : vector<8x96xbf16> to vector<8x8xbf16>
    %27 = vector.extract_strided_slice %5 {offsets = [0, 88], sizes = [8, 8], strides = [1, 1]} : vector<8x96xbf16> to vector<8x8xbf16>
    %28 = vector.shape_cast %24 : vector<8x8xbf16> to vector<1x8x8xbf16>
    %29 = vector.shape_cast %25 : vector<8x8xbf16> to vector<1x8x8xbf16>
    %30 = vector.shape_cast %26 : vector<8x8xbf16> to vector<1x8x8xbf16>
    %31 = vector.shape_cast %27 : vector<8x8xbf16> to vector<1x8x8xbf16>
    %32 = tpu.concatenate %28, %29, %30, %31 in 0 : vector<1x8x8xbf16>, vector<1x8x8xbf16>, vector<1x8x8xbf16>, vector<1x8x8xbf16> -> vector<4x8x8xbf16>
    %cst_4 = arith.constant dense<0.000000e+00> : vector<4x8x8xf32>
    %33 = tpu.matmul %14, %23, %cst_4 {dimension_numbers = #tpu.dot_dimension_numbers<[2], [2], [1], [1], [0, 0, 0, 1, 1, 1], [0], [0]>} : vector<4x8x8xbf16>, vector<4x8x8xbf16>, vector<4x8x8xf32> -> vector<4x8x8xf32>
    %34 = tpu.iota {dimensions = array<i32: 0>} : vector<8x8xi32>
    %35 = tpu.iota {dimensions = array<i32: 1>} : vector<8x8xi32>
    %36 = arith.cmpi sle, %35, %34 : vector<8x8xi32>
    %cst_5 = arith.constant 0.000000e+00 : f32
    %cst_6 = arith.constant -1.000000e+30 : f32
    %37 = vector.broadcast %cst_5 : f32 to vector<8x8xf32>
    %38 = vector.broadcast %cst_6 : f32 to vector<8x8xf32>
    %39 = arith.select %36, %37, %38 : vector<8x8xi1>, vector<8x8xf32>
    %40 = vector.shape_cast %39 : vector<8x8xf32> to vector<1x8x8xf32>
    %41 = vector.broadcast %40 : vector<1x8x8xf32> to vector<4x8x8xf32>
    %42 = arith.addf %33, %41 : vector<4x8x8xf32>
    %cst_7 = arith.constant dense<0xFF800000> : vector<4x8xf32>
    %43 = vector.multi_reduction <maximumf>, %42, %cst_7 [2] : vector<4x8x8xf32> to vector<4x8xf32>
    %44 = vector.shape_cast %43 : vector<4x8xf32> to vector<4x8x1xf32>
    %45 = vector.broadcast %44 : vector<4x8x1xf32> to vector<4x8x8xf32>
    %46 = arith.subf %42, %45 : vector<4x8x8xf32>
    %47 = math.exp %46 : vector<4x8x8xf32>
    %cst_8 = arith.constant dense<0.000000e+00> : vector<4x8xf32>
    %48 = vector.multi_reduction <add>, %47, %cst_8 [2] : vector<4x8x8xf32> to vector<4x8xf32>
    %49 = vector.shape_cast %48 : vector<4x8xf32> to vector<4x8x1xf32>
    %50 = arith.truncf %47 : vector<4x8x8xf32> to vector<4x8x8xbf16>
    %cst_9 = arith.constant dense<0.000000e+00> : vector<4x8x8xf32>
    %51 = tpu.matmul %50, %32, %cst_9 {dimension_numbers = #tpu.dot_dimension_numbers<[2], [1], [1], [2], [0, 0, 0, 1, 1, 2], [0], [0]>} : vector<4x8x8xbf16>, vector<4x8x8xbf16>, vector<4x8x8xf32> -> vector<4x8x8xf32>
    %52 = tpu.reciprocal %49 {approx = true} : vector<4x8x1xf32> -> vector<4x8x1xf32>
    %53 = vector.broadcast %52 : vector<4x8x1xf32> to vector<4x8x8xf32>
    %54 = arith.mulf %51, %53 : vector<4x8x8xf32>
    %55 = arith.truncf %54 : vector<4x8x8xf32> to vector<4x8x8xbf16>
    %c0_10 = arith.constant 0 : index
    %c0_11 = arith.constant 0 : index
    %c0_12 = arith.constant 0 : index
    %56 = vector.load %arg3[%c0_10, %c0_11, %c0_12] : memref<4x8x32xbf16, #tpu.memory_space<vmem>>, vector<4x8x32xbf16>
    %cst_13 = arith.constant dense<0.000000e+00> : vector<4x8x32xf32>
    %57 = tpu.matmul %55, %56, %cst_13 {dimension_numbers = #tpu.dot_dimension_numbers<[2], [1], [1], [2], [0, 0, 0, 1, 1, 2], [0], [0]>} : vector<4x8x8xbf16>, vector<4x8x32xbf16>, vector<4x8x32xf32> -> vector<4x8x32xf32>
    %cst_14 = arith.constant dense<0.000000e+00> : vector<8x32xf32>
    %58 = vector.multi_reduction <add>, %57, %cst_14 [0] : vector<4x8x32xf32> to vector<8x32xf32>
    %c0_15 = arith.constant 0 : index
    %c0_16 = arith.constant 0 : index
    %59 = vector.load %arg4[%c0_15, %c0_16] : memref<1x32xf32, #tpu.memory_space<vmem>>, vector<1x32xf32>
    %60 = vector.broadcast %59 : vector<1x32xf32> to vector<8x32xf32>
    %61 = arith.addf %58, %60 : vector<8x32xf32>
    %62 = vector.shape_cast %61 : vector<8x32xf32> to vector<1x8x32xf32>
    %c0_17 = arith.constant 0 : index
    %c0_18 = arith.constant 0 : index
    %c0_19 = arith.constant 0 : index
    %63 = vector.load %arg5[%c0_17, %c0_18, %c0_19] : memref<1x8x32xf32, #tpu.memory_space<vmem>>, vector<1x8x32xf32>
    tpu.vector_store %arg5[%c0_17, %c0_18, %c0_19], %62 {strides = array<i32>} : memref<1x8x32xf32, #tpu.memory_space<vmem>>, vector<1x8x32xf32>,
    return
  }
  func.func @transform_0(%arg0: i32) -> (i32, i32, i32) {
    %c0_i32 = arith.constant 0 : i32
    %c0_i32_0 = arith.constant 0 : i32
    %c0_i32_1 = arith.constant 0 : i32
    return %arg0, %c0_i32, %c0_i32_0 : i32, i32, i32
  }
  func.func @transform_1(%arg0: i32) -> (i32, i32) {
    %c0_i32 = arith.constant 0 : i32
    %c0_i32_0 = arith.constant 0 : i32
    %c0_i32_1 = arith.constant 0 : i32
    return %c0_i32, %c0_i32_0 : i32, i32
  }
  func.func @transform_2(%arg0: i32) -> (i32, i32, i32) {
    %c0_i32 = arith.constant 0 : i32
    %c0_i32_0 = arith.constant 0 : i32
    %c0_i32_1 = arith.constant 0 : i32
    %c0_i32_2 = arith.constant 0 : i32
    return %c0_i32, %c0_i32_0, %c0_i32_1 : i32, i32, i32
  }
  func.func @transform_3(%arg0: i32) -> (i32, i32) {
    %c0_i32 = arith.constant 0 : i32
    %c0_i32_0 = arith.constant 0 : i32
    %c0_i32_1 = arith.constant 0 : i32
    return %c0_i32, %c0_i32_0 : i32, i32
  }
  func.func @transform_4(%arg0: i32) -> (i32, i32, i32) {
    %c0_i32 = arith.constant 0 : i32
    %c0_i32_0 = arith.constant 0 : i32
    %c0_i32_1 = arith.constant 0 : i32
    return %arg0, %c0_i32, %c0_i32_0 : i32, i32, i32
  }
}

</mosaic_0001>

<llo_original>
// kernel: tpu_custom_call.1
$region0: #{tpu_custom_call.1}
  #allocation0 [shape = 'u32[]', space=smem, size = 0x4, offset = 0x4, fixed_abs, tag = 'smem constant byte address 0x4 - core index']
  #allocation1 [shape = 'u32[72,128]{1,0:T(1,128)}', space=vmem, size = 0x9000, scoped, tag = 'internal scratch']
  %s0 = inlined_call_operand.hbm [shape: f32[2,8,32], index: 0, kind: input, shape index: {}]
  %s1 = inlined_call_operand.hbm [shape: bf16[32,96], index: 1, kind: input, shape index: {}]
  %s2 = inlined_call_operand.hbm [shape: bf16[4,8,32], index: 2, kind: input, shape index: {}]
  %s3 = inlined_call_operand.vmem [shape: f32[1,32], index: 3, kind: input, shape index: {}]
  %s4 = inlined_call_operand.hbm [shape: f32[2,8,32], index: 4, kind: output, shape index: {}]
  %s5 = sld [smem:[#allocation0]]
  $region61: #{tpu_custom_call.1} parent=0
    _
  %s7 = ssub.s32 1, %s5
  %s8 = scalar_select 0, %s7, %s5
  $region1: #{tpu_custom_call.1} parent=0
    #allocation2 [shape = 'u8[8192]{0}', space=vmem, size = 0x2000, scoped, tag = 'input window, operand 0']
    #allocation3 [shape = 's32[2]{0}', space=sflag, size = 0x8, scoped, tag = 'scoped memory for tpu_custom_call.1']
    #allocation4 [shape = 's32[2]{0}', space=sflag, size = 0x8, scoped, tag = 'scoped memory for tpu_custom_call.1']
    #allocation5 [shape = 'u8[8192]{0}', space=vmem, size = 0x2000, scoped, tag = 'input window, operand 1, single buffered']
    #allocation6 [shape = 's32[1]{0}', space=sflag, size = 0x4, scoped, tag = 'scoped memory for tpu_custom_call.1']
    #allocation7 [shape = 'u8[8192]{0}', space=vmem, size = 0x2000, scoped, tag = 'input window, operand 2, single buffered']
    #allocation8 [shape = 'u8[8192]{0}', space=vmem, size = 0x2000, scoped, tag = 'output window, operand 0']
    %9 = vsyncpa [#allocation3], 0
    %s10 = scalar_lea.sflag [#allocation3], 1
    %11 = vsyncpa %s10, 0
    %12 = vsyncpa [#allocation6], 0
    %13 = vsyncpa [#allocation4], 0
    %s14 = scalar_lea.sflag [#allocation4], 1
    %15 = vsyncpa %s14, 0
    loop: start=0, step=1, limit=4
    $region2: #{tpu_custom_call.1} parent=1 // loop_pre_header
      _
    $region3: #{tpu_custom_call.1} parent=1 // loop_header
      %s17 = sphi 0, %s21
      %p18 = scmp.ge.s32.totalorder %s17, 4
      %s27 = sphi 0, %s29
      %s30 = sphi 0, %s27
      %s31 = sphi 0, %s30
      %s47 = sphi 0, %s31
      %s51 = sphi 0, %s51
      %s53 = sphi 0, %s51
      %s54 = sphi 0, %s53
      %s68 = sphi 0, %s54
      %s72 = sphi 0, %s72
      %s74 = sphi 0, %s72
      %s75 = sphi 0, %s74
      %s89 = sphi 0, %s75
      %s93 = sphi 0, %s93
      %s95 = sphi 0, %s93
      %s96 = sphi 0, %s95
      %s110 = sphi 0, %s96
      %s116 = sphi 0, %s118
      %s119 = sphi 0, %s116
      %s120 = sphi 0, %s119
      %s136 = sphi 0, %s120
    $region4: #{tpu_custom_call.1} parent=1 // loop_header_branch
      %20 = sbr.rel (%p18) target = $region8
    $region5: #{tpu_custom_call.1} parent=1 // loop_body
      %s22 = ssub.s32 %s17, 1
      %s23 = ssub.s32 %s17, 2
      %s24 = sadd.s32 %s17, 1
      %s25 = ssub.s32 %s17, %s24
      %p26 = scmp.eq.s32.totalorder %s25, 0
      %s28 = sadd.s32 %s27, 1
      %s29 = scalar_select %p26, %s27, %s28
      %p32 = pneg %p26
      %p33 = scmp.eq.s32.totalorder %s17, 1
      %p34 = por %p32, %p33
      %p35 = scmp.ne.s32.totalorder %s27, %s30
      %p36 = scmp.eq.s32.totalorder %s17, 0
      %p37 = por %p35, %p36
      %p38 = scmp.ne.s32.totalorder %s27, %s30
      %p39 = scmp.eq.s32.totalorder %s22, 1
      %p40 = por %p38, %p39
      %p41 = scmp.ne.s32.totalorder %s30, %s31
      %p42 = scmp.eq.s32.totalorder %s22, 0
      %p43 = por %p41, %p42
      %p44 = scmp.ne.s32.totalorder %s30, %s31
      %p45 = scmp.eq.s32.totalorder %s23, 1
      %p46 = por %p44, %p45
      %p48 = scmp.ne.s32.totalorder %s31, %s47
      %p49 = scmp.eq.s32.totalorder %s23, 0
      %p50 = por %p48, %p49
      %s52 = sadd.s32 %s51, 1
      %p55 = scmp.eq.s32.totalorder %s17, 1
      %p56 = scmp.ne.s32.totalorder %s51, %s53
      %p57 = scmp.eq.s32.totalorder %s17, 0
      %p58 = por %p56, %p57
      %p59 = scmp.ne.s32.totalorder %s51, %s53
      %p60 = scmp.eq.s32.totalorder %s22, 1
      %p61 = por %p59, %p60
      %p62 = scmp.ne.s32.totalorder %s53, %s54
      %p63 = scmp.eq.s32.totalorder %s22, 0
      %p64 = por %p62, %p63
      %p65 = scmp.ne.s32.totalorder %s53, %s54
      %p66 = scmp.eq.s32.totalorder %s23, 1
      %p67 = por %p65, %p66
      %p69 = scmp.ne.s32.totalorder %s54, %s68
      %p70 = scmp.eq.s32.totalorder %s23, 0
      %p71 = por %p69, %p70
      %s73 = sadd.s32 %s72, 1
      %p76 = scmp.eq.s32.totalorder %s17, 1
      %p77 = scmp.ne.s32.totalorder %s72, %s74
      %p78 = scmp.eq.s32.totalorder %s17, 0
      %p79 = por %p77, %p78
      %p80 = scmp.ne.s32.totalorder %s72, %s74
      %p81 = scmp.eq.s32.totalorder %s22, 1
      %p82 = por %p80, %p81
      %p83 = scmp.ne.s32.totalorder %s74, %s75
      %p84 = scmp.eq.s32.totalorder %s22, 0
      %p85 = por %p83, %p84
      %p86 = scmp.ne.s32.totalorder %s74, %s75
      %p87 = scmp.eq.s32.totalorder %s23, 1
      %p88 = por %p86, %p87
      %p90 = scmp.ne.s32.totalorder %s75, %s89
      %p91 = scmp.eq.s32.totalorder %s23, 0
      %p92 = por %p90, %p91
      %s94 = sadd.s32 %s93, 1
      %p97 = scmp.eq.s32.totalorder %s17, 1
      %p98 = scmp.ne.s32.totalorder %s93, %s95
      %p99 = scmp.eq.s32.totalorder %s17, 0
      %p100 = por %p98, %p99
      %p101 = scmp.ne.s32.totalorder %s93, %s95
      %p102 = scmp.eq.s32.totalorder %s22, 1
      %p103 = por %p101, %p102
      %p104 = scmp.ne.s32.totalorder %s95, %s96
      %p105 = scmp.eq.s32.totalorder %s22, 0
      %p106 = por %p104, %p105
      %p107 = scmp.ne.s32.totalorder %s95, %s96
      %p108 = scmp.eq.s32.totalorder %s23, 1
      %p109 = por %p107, %p108
      %p111 = scmp.ne.s32.totalorder %s96, %s110
      %p112 = scmp.eq.s32.totalorder %s23, 0
      %p113 = por %p111, %p112
      %s114 = ssub.s32 %s17, %s24
      %p115 = scmp.eq.s32.totalorder %s114, 0
      %s117 = sadd.s32 %s116, 1
      %s118 = scalar_select %p115, %s116, %s117
      %p121 = pneg %p115
      %p122 = scmp.eq.s32.totalorder %s17, 1
      %p123 = por %p121, %p122
      %p124 = scmp.ne.s32.totalorder %s116, %s119
      %p125 = scmp.eq.s32.totalorder %s17, 0
      %p126 = por %p124, %p125
      %p127 = scmp.ne.s32.totalorder %s116, %s119
      %p128 = scmp.eq.s32.totalorder %s22, 1
      %p129 = por %p127, %p128
      %p130 = scmp.ne.s32.totalorder %s119, %s120
      %p131 = scmp.eq.s32.totalorder %s22, 0
      %p132 = por %p130, %p131
      %p133 = scmp.ne.s32.totalorder %s119, %s120
      %p134 = scmp.eq.s32.totalorder %s23, 1
      %p135 = por %p133, %p134
      %p137 = scmp.ne.s32.totalorder %s120, %s136
      %p138 = scmp.eq.s32.totalorder %s23, 0
      %p139 = por %p137, %p138
      %p140 = scmp.le.s32.totalorder 1, %s17
      %p141 = scmp.lt.s32.totalorder %s17, 3
      %p142 = pnand %p140, %p141
      %p143 = pneg %p142
      // Predicated region
      $region9: #{tpu_custom_call.1} parent=5 // pred_check
        _
      $region10: #{tpu_custom_call.1} parent=5 // pred_check_branch
        %145 = sbr.rel (%p142) target = $region12
      $region11: #{tpu_custom_call.1} parent=5 // pred_region
        %s146 = ssub.s32 %s17, 1
        // Predicated region
        $region13: #{tpu_custom_call.1} parent=11 // pred_check
          %p147 = pneg %p64
        $region14: #{tpu_custom_call.1} parent=11 // pred_check_branch
          %149 = sbr.rel (%p147) target = $region16
        $region15: #{tpu_custom_call.1} parent=11 // pred_region
          %151 = vsyncadd [#allocation6], 0
          %s152 = sshll.u32 %s1, 4
          %s153 = int_to_ptr.hbm [resolvable:$true] %s152
          %s154 = sshll.u32 [#allocation5], 4
          %s155 = int_to_ptr.vmem [resolvable:$true] %s154
          %160 = dma.hbm_to_vmem [thread:$0]  %s153, 256, %s155, [#allocation6], 64, 64, 4
        $region16: #{tpu_custom_call.1} parent=11 // pred_fallthru
          _
        // Predicated region
        $region17: #{tpu_custom_call.1} parent=11 // pred_check
          %p161 = pneg %p85
        $region18: #{tpu_custom_call.1} parent=11 // pred_check_branch
          %163 = sbr.rel (%p161) target = $region20
        $region19: #{tpu_custom_call.1} parent=11 // pred_region
          %165 = vsyncadd [#allocation6], 0
          %s166 = sshll.u32 %s2, 4
          %s167 = int_to_ptr.hbm [resolvable:$true] %s166
          %s168 = sshll.u32 [#allocation7], 4
          %s169 = int_to_ptr.vmem [resolvable:$true] %s168
          %174 = dma.hbm_to_vmem [thread:$0]  %s167, 256, %s169, [#allocation6], 64, 64, 4
        $region20: #{tpu_custom_call.1} parent=11 // pred_fallthru
          _
        // Predicated region
        $region21: #{tpu_custom_call.1} parent=11 // pred_check
          %p175 = pneg %p106
        $region22: #{tpu_custom_call.1} parent=11 // pred_check_branch
          %177 = sbr.rel (%p175) target = $region24
        $region23: #{tpu_custom_call.1} parent=11 // pred_region
          _
        $region24: #{tpu_custom_call.1} parent=11 // pred_fallthru
          _
      $region12: #{tpu_custom_call.1} parent=5 // pred_fallthru
        _
      %p178 = scmp.lt.s32.totalorder %s17, 2
      // Predicated region
      $region25: #{tpu_custom_call.1} parent=5 // pred_check
        %p179 = pneg %p178
      $region26: #{tpu_custom_call.1} parent=5 // pred_check_branch
        %181 = sbr.rel (%p179) target = $region28
      $region27: #{tpu_custom_call.1} parent=5 // pred_region
        // Predicated region
        $region29: #{tpu_custom_call.1} parent=27 // pred_check
          %p182 = pneg %p37
        $region30: #{tpu_custom_call.1} parent=27 // pred_check_branch
          %184 = sbr.rel (%p182) target = $region32
        $region31: #{tpu_custom_call.1} parent=27 // pred_region
          %s185 = sand.u32 %s27, 1
          %s186 = scalar_lea.sflag [#allocation3], %s185
          %s187 = sand.u32 %s27, 1
          %s188 = smul.addr %s187, 8
          %s189 = scalar_lea.vmem [#allocation2], %s188
          %191 = vsyncadd %s186, 0
          %s192 = smul.addr %s17, 8
          %s193 = scalar_lea.hbm %s0, %s192
          %s195 = sshll.u32 %s193, 4
          %s196 = int_to_ptr.hbm [resolvable:$true] %s195
          %s197 = sshll.u32 %s189, 4
          %s198 = int_to_ptr.vmem [resolvable:$true] %s197
          %200 = dma.hbm_to_vmem [thread:$0]  %s196, 128, %s198, %s186
        $region32: #{tpu_custom_call.1} parent=27 // pred_fallthru
          _
      $region28: #{tpu_custom_call.1} parent=5 // pred_fallthru
        _
      %p201 = scmp.le.s32.totalorder 1, %s17
      %p202 = scmp.lt.s32.totalorder %s17, 3
      %p203 = pnand %p201, %p202
      %p204 = pneg %p203
      // Predicated region
      $region33: #{tpu_custom_call.1} parent=5 // pred_check
        _
      $region34: #{tpu_custom_call.1} parent=5 // pred_check_branch
        %206 = sbr.rel (%p203) target = $region36
      $region35: #{tpu_custom_call.1} parent=5 // pred_region
        %s207 = ssub.s32 %s17, 1
        %s208 = sand.u32 %s30, 1
        %s209 = scalar_lea.sflag [#allocation3], %s208
        %s210 = sand.u32 %s30, 1
        %s211 = smul.addr %s210, 8
        %s212 = scalar_lea.vmem [#allocation2], %s211
        // Predicated region
        $region37: #{tpu_custom_call.1} parent=35 // pred_check
          %p213 = pneg %p43
        $region38: #{tpu_custom_call.1} parent=35 // pred_check_branch
          %215 = sbr.rel (%p213) target = $region40
        $region39: #{tpu_custom_call.1} parent=35 // pred_region
          %217 = dma.done %s209, 128
        $region40: #{tpu_custom_call.1} parent=35 // pred_fallthru
          _
        // Predicated region
        $region41: #{tpu_custom_call.1} parent=35 // pred_check
          %p218 = pneg %p64
        $region42: #{tpu_custom_call.1} parent=35 // pred_check_branch
          %220 = sbr.rel (%p218) target = $region44
        $region43: #{tpu_custom_call.1} parent=35 // pred_region
          %222 = dma.done [#allocation6], 256
        $region44: #{tpu_custom_call.1} parent=35 // pred_fallthru
          _
        // Predicated region
        $region45: #{tpu_custom_call.1} parent=35 // pred_check
          %p223 = pneg %p85
        $region46: #{tpu_custom_call.1} parent=35 // pred_check_branch
          %225 = sbr.rel (%p223) target = $region48
        $region47: #{tpu_custom_call.1} parent=35 // pred_region
          %227 = dma.done [#allocation6], 256
        $region48: #{tpu_custom_call.1} parent=35 // pred_fallthru
          _
        %s228 = sand.u32 %s30, 1
        %s229 = scalar_lea.sflag [#allocation3], %s228
        %s230 = sand.u32 %s30, 1
        %s231 = smul.addr %s230, 8
        %s232 = scalar_lea.vmem [#allocation2], %s231
        %p233 = pneg %p43
        %p234 = pneg %p40
        %p235 = pneg %p64
        %p236 = pneg %p61
        %p237 = pneg %p85
        %p238 = pneg %p82
        %p239 = pneg %p106
        %p240 = pneg %p103
        %p241 = pneg %p132
        %p242 = pneg %p129
        %s243 = sand.u32 %s119, 1
        %s244 = scalar_lea.sflag [#allocation4], %s243
        %s245 = sand.u32 %s119, 1
        %s246 = smul.addr %s245, 8
        %s247 = scalar_lea.vmem [#allocation8], %s246
        %v249 = vld [vmem:[%s212] sm:$0xff]
        %v250 = vpack.c.bf16 %v249, %v249
        %v251 = vld [vmem:[#allocation5] sm:$0xf]
        %v252 = vld [vmem:[#allocation5 + $0x4] sm:$0xf]
        %v253 = vld [vmem:[#allocation5 + $0x8] sm:$0xf]
        %v254 = vld [vmem:[#allocation5 + $0xc] sm:$0xf]
        %v259 = vunpack.c.l.b16 %v251
        %v260 = vunpack.c.l.b16 %v252
        %v261 = vunpack.c.l.b16 %v253
        %v262 = vunpack.c.l.b16 %v254
        %v263 = vpack.c.b16 %v260, %v259
        %v264 = vpack.c.b16 %v262, %v261
        %vm267 = vcmask 261120
        %v269 = vsel %vm267, %v250, 0
        %271 = vmatpush.bf16.msra.mxu0 0
        %272 = vmatpush.bf16.msra.mxu0 0
        %273 = vmatpush.bf16.msra.mxu0 0
        %274 = vmatpush.bf16.msra.mxu0 0
        %275 = vmatpush.bf16.msra.mxu0 0
        %276 = vmatpush.bf16.msra.mxu0 0
        %277 = vmatpush.bf16.msra.mxu0 %v264
        %278 = vmatpush.bf16.msra.mxu0 %v263
        %279 = vmatmul.bf16.gmra.mxu0 %v269
        %v280 = vpop.f32.mrf.mxu0
        %v281 = vadd.f32 0.0, %v280
        %v282 = vpop.f32.mrf.mxu0
        %283 = vdwg.mxu0
        %v284 = vpack.c.bf16 %v281, %v281
        %286 = vrot.lane.b32.xlu0 %v284, 120
        %v287 = vpop.permute.xlu0 %286
        %288 = vrot.lane.b32.xlu0 %v284, 112
        %v289 = vpop.permute.xlu0 %288
        %290 = vrot.lane.b32.xlu0 %v284, 104
        %v291 = vpop.permute.xlu0 %290
        %v292 = vlaneseq
        %v293 = vshrl.u32 %v292, 7
        %v294 = vlaneseq
        %v295 = vand.u32 %v294, 127
        %vm296 = vcmp.le.s32.totalorder %v295, %v293
        %v297 = vsel %vm296, 0.0, -1e+30
        %v298 = vunpack.c.l.b16 %v284
        %v299 = vpack.c.b16 %v298, %v298
        %300 = vrot.lane.b32.xlu0 %v299, 96
        %v301 = vpop.permute.xlu0 %300
        %vm302 = vcmask 64512
        %v304 = vsel %vm302, %v284, 0
        %v307 = vsel %vm302, %v301, 0
        %309 = vmatpush.bf16.xpose.msra.mxu0 0
        %310 = vmatpush.bf16.xpose.msra.mxu0 0
        %311 = vmatpush.bf16.xpose.msra.mxu0 0
        %312 = vmatpush.bf16.xpose.msra.mxu0 0
        %313 = vmatpush.bf16.xpose.msra.mxu0 0
        %314 = vmatpush.bf16.xpose.msra.mxu0 0
        %315 = vmatpush.bf16.xpose.msra.mxu0 0
        %316 = vmatpush.bf16.xpose.msra.mxu0 %v307
        %317 = vmatmul.bf16.gmra.mxu0 %v304
        %v318 = vpop.f32.mrf.mxu0
        %v319 = vadd.f32 %v297, %v318
        %v320 = vpop.f32.mrf.mxu0
        %321 = vdwg.mxu0
        %v322 = vunpack.c.l.b16 %v287
        %v323 = vpack.c.b16 %v322, %v322
        %324 = vrot.lane.b32.xlu0 %v323, 96
        %v325 = vpop.permute.xlu0 %324
        %v327 = vsel %vm302, %v287, 0
        %v330 = vsel %vm302, %v325, 0
        %332 = vmatpush.bf16.xpose.msra.mxu0 0
        %333 = vmatpush.bf16.xpose.msra.mxu0 0
        %334 = vmatpush.bf16.xpose.msra.mxu0 0
        %335 = vmatpush.bf16.xpose.msra.mxu0 0
        %336 = vmatpush.bf16.xpose.msra.mxu0 0
        %337 = vmatpush.bf16.xpose.msra.mxu0 0
        %338 = vmatpush.bf16.xpose.msra.mxu0 0
        %339 = vmatpush.bf16.xpose.msra.mxu0 %v330
        %340 = vmatmul.bf16.gmra.mxu0 %v327
        %v341 = vpop.f32.mrf.mxu0
        %v342 = vadd.f32 %v297, %v341
        %v343 = vpop.f32.mrf.mxu0
        %344 = vdwg.mxu0
        %v345 = vunpack.c.l.b16 %v289
        %v346 = vpack.c.b16 %v345, %v345
        %347 = vrot.lane.b32.xlu0 %v346, 96
        %v348 = vpop.permute.xlu0 %347
        %v350 = vsel %vm302, %v289, 0
        %v353 = vsel %vm302, %v348, 0
        %355 = vmatpush.bf16.xpose.msra.mxu0 0
        %356 = vmatpush.bf16.xpose.msra.mxu0 0
        %357 = vmatpush.bf16.xpose.msra.mxu0 0
        %358 = vmatpush.bf16.xpose.msra.mxu0 0
        %359 = vmatpush.bf16.xpose.msra.mxu0 0
        %360 = vmatpush.bf16.xpose.msra.mxu0 0
        %361 = vmatpush.bf16.xpose.msra.mxu0 0
        %362 = vmatpush.bf16.xpose.msra.mxu0 %v353
        %363 = vmatmul.bf16.gmra.mxu0 %v350
        %v364 = vpop.f32.mrf.mxu0
        %v365 = vadd.f32 %v297, %v364
        %v366 = vpop.f32.mrf.mxu0
        %367 = vdwg.mxu0
        %v368 = vunpack.c.l.b16 %v291
        %v369 = vpack.c.b16 %v368, %v368
        %370 = vrot.lane.b32.xlu0 %v369, 96
        %v371 = vpop.permute.xlu0 %370
        %v373 = vsel %vm302, %v291, 0
        %v376 = vsel %vm302, %v371, 0
        %378 = vmatpush.bf16.xpose.msra.mxu0 0
        %379 = vmatpush.bf16.xpose.msra.mxu0 0
        %380 = vmatpush.bf16.xpose.msra.mxu0 0
        %381 = vmatpush.bf16.xpose.msra.mxu0 0
        %382 = vmatpush.bf16.xpose.msra.mxu0 0
        %383 = vmatpush.bf16.xpose.msra.mxu0 0
        %384 = vmatpush.bf16.xpose.msra.mxu0 0
        %385 = vmatpush.bf16.xpose.msra.mxu0 %v376
        %386 = vmatmul.bf16.gmra.mxu0 %v373
        %v387 = vpop.f32.mrf.mxu0
        %v388 = vadd.f32 %v297, %v387
        %v389 = vpop.f32.mrf.mxu0
        %390 = vdwg.mxu0
        %v391 = vsel %vm302, %v319, -inf
        %392 = vmax.xlane.f32.xlu0 %v391
        %v393 = vpop.xlane.xlu0 %392
        %v394 = vsel %vm302, %v342, -inf
        %395 = vmax.xlane.f32.xlu0 %v394
        %v396 = vpop.xlane.xlu0 %395
        %v397 = vsel %vm302, %v365, -inf
        %398 = vmax.xlane.f32.xlu0 %v397
        %v399 = vpop.xlane.xlu0 %398
        %v400 = vsel %vm302, %v388, -inf
        %401 = vmax.xlane.f32.xlu0 %v400
        %v402 = vpop.xlane.xlu0 %401
        %v403 = vsub.f32 %v319, %v393
        %v404 = vsub.f32 %v342, %v396
        %v405 = vsub.f32 %v365, %v399
        %v406 = vsub.f32 %v388, %v402
        %v407 = vmul.f32 %v403, 1.442695
        %v408 = vpow.pop %v407
        %v409 = vmul.f32 %v404, 1.442695
        %v410 = vpow.pop %v409
        %v411 = vmul.f32 %v405, 1.442695
        %v412 = vpow.pop %v411
        %v413 = vmul.f32 %v406, 1.442695
        %v414 = vpow.pop %v413
        %v415 = vsel %vm302, %v408, 0.0
        %416 = vadd.xlane.f32.xlu0 %v415
        %v417 = vpop.xlane.xlu0 %416
        %v418 = vsel %vm302, %v410, 0.0
        %419 = vadd.xlane.f32.xlu0 %v418
        %v420 = vpop.xlane.xlu0 %419
        %v421 = vsel %vm302, %v412, 0.0
        %422 = vadd.xlane.f32.xlu0 %v421
        %v423 = vpop.xlane.xlu0 %422
        %v424 = vsel %vm302, %v414, 0.0
        %425 = vadd.xlane.f32.xlu0 %v424
        %v426 = vpop.xlane.xlu0 %425
        %v427 = vpack.c.bf16 %v408, %v408
        %v428 = vpack.c.bf16 %v410, %v410
        %v429 = vpack.c.bf16 %v412, %v412
        %v430 = vpack.c.bf16 %v414, %v414
        %431 = vrot.lane.b32.xlu0 %v299, 64
        %v432 = vpop.permute.xlu0 %431
        %v434 = vsel %vm302, %v427, 0
        %vm436 = vcmask 1043456
        %v438 = vsel %vm436, %v432, 0
        %440 = vmatpush.bf16.msra.mxu0 0
        %441 = vmatpush.bf16.msra.mxu0 0
        %442 = vmatpush.bf16.msra.mxu0 0
        %443 = vmatpush.bf16.msra.mxu0 0
        %444 = vmatpush.bf16.msra.mxu0 0
        %445 = vmatpush.bf16.msra.mxu0 0
        %446 = vmatpush.bf16.msra.mxu0 0
        %447 = vmatpush.bf16.msra.mxu0 %v438
        %448 = vmatmul.bf16.gmra.mxu0 %v434
        %v449 = vpop.f32.mrf.mxu0
        %v450 = vadd.f32 0.0, %v449
        %v451 = vpop.f32.mrf.mxu0
        %452 = vdwg.mxu0
        %453 = vrot.lane.b32.xlu0 %v323, 64
        %v454 = vpop.permute.xlu0 %453
        %v456 = vsel %vm302, %v428, 0
        %v459 = vsel %vm436, %v454, 0
        %461 = vmatpush.bf16.msra.mxu0 0
        %462 = vmatpush.bf16.msra.mxu0 0
        %463 = vmatpush.bf16.msra.mxu0 0
        %464 = vmatpush.bf16.msra.mxu0 0
        %465 = vmatpush.bf16.msra.mxu0 0
        %466 = vmatpush.bf16.msra.mxu0 0
        %467 = vmatpush.bf16.msra.mxu0 0
        %468 = vmatpush.bf16.msra.mxu0 %v459
        %469 = vmatmul.bf16.gmra.mxu0 %v456
        %v470 = vpop.f32.mrf.mxu0
        %v471 = vadd.f32 0.0, %v470
        %v472 = vpop.f32.mrf.mxu0
        %473 = vdwg.mxu0
        %474 = vrot.lane.b32.xlu0 %v346, 64
        %v475 = vpop.permute.xlu0 %474
        %v477 = vsel %vm302, %v429, 0
        %v480 = vsel %vm436, %v475, 0
        %482 = vmatpush.bf16.msra.mxu0 0
        %483 = vmatpush.bf16.msra.mxu0 0
        %484 = vmatpush.bf16.msra.mxu0 0
        %485 = vmatpush.bf16.msra.mxu0 0
        %486 = vmatpush.bf16.msra.mxu0 0
        %487 = vmatpush.bf16.msra.mxu0 0
        %488 = vmatpush.bf16.msra.mxu0 0
        %489 = vmatpush.bf16.msra.mxu0 %v480
        %490 = vmatmul.bf16.gmra.mxu0 %v477
        %v491 = vpop.f32.mrf.mxu0
        %v492 = vadd.f32 0.0, %v491
        %v493 = vpop.f32.mrf.mxu0
        %494 = vdwg.mxu0
        %495 = vrot.lane.b32.xlu0 %v369, 64
        %v496 = vpop.permute.xlu0 %495
        %v498 = vsel %vm302, %v430, 0
        %v501 = vsel %vm436, %v496, 0
        %503 = vmatpush.bf16.msra.mxu0 0
        %504 = vmatpush.bf16.msra.mxu0 0
        %505 = vmatpush.bf16.msra.mxu0 0
        %506 = vmatpush.bf16.msra.mxu0 0
        %507 = vmatpush.bf16.msra.mxu0 0
        %508 = vmatpush.bf16.msra.mxu0 0
        %509 = vmatpush.bf16.msra.mxu0 0
        %510 = vmatpush.bf16.msra.mxu0 %v501
        %511 = vmatmul.bf16.gmra.mxu0 %v498
        %v512 = vpop.f32.mrf.mxu0
        %v513 = vadd.f32 0.0, %v512
        %v514 = vpop.f32.mrf.mxu0
        %515 = vdwg.mxu0
        %v516 = vrcp.pop %v417
        %v517 = vrcp.pop %v420
        %v518 = vrcp.pop %v423
        %v519 = vrcp.pop %v426
        %v520 = vmul.f32 %v450, %v516
        %v521 = vmul.f32 %v471, %v517
        %v522 = vmul.f32 %v492, %v518
        %v523 = vmul.f32 %v513, %v519
        %v524 = vpack.c.bf16 %v520, %v520
        %v525 = vpack.c.bf16 %v521, %v521
        %v526 = vpack.c.bf16 %v522, %v522
        %v527 = vpack.c.bf16 %v523, %v523
        %v528 = vld [vmem:[#allocation7] sm:$0xf]
        %v529 = vld [vmem:[#allocation7 + $0x4] sm:$0xf]
        %v530 = vld [vmem:[#allocation7 + $0x8] sm:$0xf]
        %v531 = vld [vmem:[#allocation7 + $0xc] sm:$0xf]
        %v533 = vsel %vm302, %v524, 0
        %v536 = vsel %vm436, %v528, 0
        %538 = vmatpush.bf16.msra.mxu0 0
        %539 = vmatpush.bf16.msra.mxu0 0
        %540 = vmatpush.bf16.msra.mxu0 0
        %541 = vmatpush.bf16.msra.mxu0 0
        %542 = vmatpush.bf16.msra.mxu0 0
        %543 = vmatpush.bf16.msra.mxu0 0
        %544 = vmatpush.bf16.msra.mxu0 0
        %545 = vmatpush.bf16.msra.mxu0 %v536
        %546 = vmatmul.bf16.gmra.mxu0 %v533
        %v547 = vpop.f32.mrf.mxu0
        %v548 = vadd.f32 0.0, %v547
        %v549 = vpop.f32.mrf.mxu0
        %550 = vdwg.mxu0
        %v552 = vsel %vm302, %v525, 0
        %v555 = vsel %vm436, %v529, 0
        %557 = vmatpush.bf16.msra.mxu0 0
        %558 = vmatpush.bf16.msra.mxu0 0
        %559 = vmatpush.bf16.msra.mxu0 0
        %560 = vmatpush.bf16.msra.mxu0 0
        %561 = vmatpush.bf16.msra.mxu0 0
        %562 = vmatpush.bf16.msra.mxu0 0
        %563 = vmatpush.bf16.msra.mxu0 0
        %564 = vmatpush.bf16.msra.mxu0 %v555
        %565 = vmatmul.bf16.gmra.mxu0 %v552
        %v566 = vpop.f32.mrf.mxu0
        %v567 = vadd.f32 0.0, %v566
        %v568 = vpop.f32.mrf.mxu0
        %569 = vdwg.mxu0
        %v571 = vsel %vm302, %v526, 0
        %v574 = vsel %vm436, %v530, 0
        %576 = vmatpush.bf16.msra.mxu0 0
        %577 = vmatpush.bf16.msra.mxu0 0
        %578 = vmatpush.bf16.msra.mxu0 0
        %579 = vmatpush.bf16.msra.mxu0 0
        %580 = vmatpush.bf16.msra.mxu0 0
        %581 = vmatpush.bf16.msra.mxu0 0
        %582 = vmatpush.bf16.msra.mxu0 0
        %583 = vmatpush.bf16.msra.mxu0 %v574
        %584 = vmatmul.bf16.gmra.mxu0 %v571
        %v585 = vpop.f32.mrf.mxu0
        %v586 = vadd.f32 0.0, %v585
        %v587 = vpop.f32.mrf.mxu0
        %588 = vdwg.mxu0
        %v590 = vsel %vm302, %v527, 0
        %v593 = vsel %vm436, %v531, 0
        %595 = vmatpush.bf16.msra.mxu0 0
        %596 = vmatpush.bf16.msra.mxu0 0
        %597 = vmatpush.bf16.msra.mxu0 0
        %598 = vmatpush.bf16.msra.mxu0 0
        %599 = vmatpush.bf16.msra.mxu0 0
        %600 = vmatpush.bf16.msra.mxu0 0
        %601 = vmatpush.bf16.msra.mxu0 0
        %602 = vmatpush.bf16.msra.mxu0 %v593
        %603 = vmatmul.bf16.gmra.mxu0 %v590
        %v604 = vpop.f32.mrf.mxu0
        %v605 = vadd.f32 0.0, %v604
        %v606 = vpop.f32.mrf.mxu0
        %607 = vdwg.mxu0
        %v608 = vsel %vm267, %v548, 0.0
        %v609 = vsel %vm267, %v567, 0.0
        %v610 = vadd.f32 %v608, %v609
        %v611 = vsel %vm267, %v586, 0.0
        %v612 = vadd.f32 %v610, %v611
        %v613 = vsel %vm267, %v605, 0.0
        %v614 = vadd.f32 %v612, %v613
        %v615 = vld [vmem:[%s3] sm:$0x1]
        %v617 = vperm.slane %v615, 0
        %v619 = vadd.f32 %v614, %v617
        %620 = vst.msk [vmem:[%s247] sm:$0xff] %vm267, %v619
        %s621 = sand.u32 %s119, 1
        %s622 = scalar_lea.sflag [#allocation4], %s621
        %s623 = sand.u32 %s119, 1
        %s624 = smul.addr %s623, 8
        %s625 = scalar_lea.vmem [#allocation8], %s624
        // Predicated region
        $region49: #{tpu_custom_call.1} parent=35 // pred_check
          %p626 = pneg %p129
        $region50: #{tpu_custom_call.1} parent=35 // pred_check_branch
          %628 = sbr.rel (%p626) target = $region52
        $region51: #{tpu_custom_call.1} parent=35 // pred_region
          %630 = vsyncadd %s622, 0
          %s631 = smul.addr %s22, 8
          %s632 = scalar_lea.hbm %s4, %s631
          %s634 = sshll.u32 %s625, 4
          %s635 = int_to_ptr.vmem [resolvable:$true] %s634
          %s636 = sshll.u32 %s632, 4
          %s637 = int_to_ptr.hbm [resolvable:$true] %s636
          %639 = dma.vmem_to_hbm [thread:$0]  %s635, 128, %s637, %s622
        $region52: #{tpu_custom_call.1} parent=35 // pred_fallthru
          _
      $region36: #{tpu_custom_call.1} parent=5 // pred_fallthru
        _
      %p640 = scmp.le.s32.totalorder 2, %s17
      // Predicated region
      $region53: #{tpu_custom_call.1} parent=5 // pred_check
        %p641 = pneg %p640
      $region54: #{tpu_custom_call.1} parent=5 // pred_check_branch
        %643 = sbr.rel (%p641) target = $region56
      $region55: #{tpu_custom_call.1} parent=5 // pred_region
        %s644 = ssub.s32 %s17, 2
        // Predicated region
        $region57: #{tpu_custom_call.1} parent=55 // pred_check
          %p645 = pneg %p135
        $region58: #{tpu_custom_call.1} parent=55 // pred_check_branch
          %647 = sbr.rel (%p645) target = $region60
        $region59: #{tpu_custom_call.1} parent=55 // pred_region
          %s648 = sand.u32 %s120, 1
          %s649 = scalar_lea.sflag [#allocation4], %s648
          %s650 = sand.u32 %s120, 1
          %s651 = smul.addr %s650, 8
          %s652 = scalar_lea.vmem [#allocation8], %s651
          %654 = dma.done %s649, 128
        $region60: #{tpu_custom_call.1} parent=55 // pred_fallthru
          _
      $region56: #{tpu_custom_call.1} parent=5 // pred_fallthru
        _
    $region6: #{tpu_custom_call.1} parent=1 // loop_footer
      %s21 = sadd.s32 1, %s17
    $region7: #{tpu_custom_call.1} parent=1 // loop_footer_branch
      %16 = sbr.rel target = $region3
    $region8: #{tpu_custom_call.1} parent=1 // loop_exit
      _
    %655 = vsyncpa [#allocation3], 1
    %s656 = scalar_lea.sflag [#allocation3], 1
    %657 = vsyncpa %s656, 1
    %658 = vsyncpa [#allocation6], 1
    %659 = vsyncpa [#allocation4], 1
    %s660 = scalar_lea.sflag [#allocation4], 1
    %661 = vsyncpa %s660, 1

</llo_original>
